<compile_context>
chip_gen: v5e
topology: v5e:2x2
jax: 0.10.0
libtpu: 0.0.40
codegen_flags: <defaults>
</compile_context>

<pallas_src>
import functools

import jax
import jax.numpy as jnp
from jax.experimental import pallas as pl
from jax.experimental.pallas import tpu as pltpu

_FP = 128                       # padded feature width (lane-dense; covers 3, 16, 7)
_TILE_M = 512                   # row tile for large graphs
_TILE_K = 1024                  # contraction tile for large graphs
_MIB = 1024 * 1024
_X_RESIDENT_MAX_BYTES = 16 * _MIB   # cap for VMEM-resident activations (v7x-safe)


# ----------------------------- Pallas kernel ------------------------------- #
def _gcn_layer_kernel(a_ref, x_ref, w_ref, b_ref, out_ref, acc_ref, *,
                      relu, tile_k, x_resident):
    """One GCN layer, tiled over (row-tile i, contraction-tile k).

    acc  = A[i,0] @ X[0]            (k == 0, direct write)
    acc += A[i,k] @ X[k]            (k  > 0)
    out  = (acc @ W + b) [relu]     (k == last, epilogue exactly once)

    A tile is stored int8 (or bf16) and upcast to bf16 for the MXU; the int8
    dequant scale is folded into W by the wrapper.  Accumulation is f32.
    """
    k = pl.program_id(1)

    if x_resident:
        start = pl.multiple_of(k * tile_k, tile_k)
        x_blk = x_ref[pl.ds(start, tile_k), :]
    else:
        x_blk = x_ref[...]

    prod = jnp.dot(a_ref[...].astype(jnp.bfloat16), x_blk,
                   preferred_element_type=jnp.float32)

    @pl.when(k == 0)
    def _():
        acc_ref[...] = prod

    @pl.when(k > 0)
    def _():
        acc_ref[...] += prod

    @pl.when(k == pl.num_programs(1) - 1)
    def _():
        h = jnp.dot(acc_ref[...].astype(jnp.bfloat16), w_ref[...],
                    preferred_element_type=jnp.float32)
        h = h + b_ref[...]
        if relu:
            h = jnp.maximum(h, 0.0)
        out_ref[...] = h.astype(out_ref.dtype)


def _vmem_limit_bytes(n_pad, tile_m, tile_k, a_itemsize, out_itemsize, x_resident):
    x_rows = n_pad if x_resident else tile_k
    need = (
        2 * tile_m * tile_k * a_itemsize        # A tiles (double-buffered)
        + 2 * x_rows * _FP * 2                  # X / H1 (bf16)
        + 2 * _FP * _FP * 2                     # W (bf16)
        + 2 * 8 * _FP * 4                       # bias (sublane-padded, f32)
        + 2 * tile_m * _FP * out_itemsize       # output tiles
        + tile_m * _FP * 4                      # f32 accumulator scratch
    )
    # 2x headroom for compiler-internal scratch, floor 24 MiB, stay under the
    # 64 MiB physical VMEM of v7x.
    return int(min(60 * _MIB, max(24 * _MIB, 2 * need)))


def _make_layer_call(n_pad, tile_m, tile_k, *, relu, out_dtype, a_dtype, x_resident):
    grid = (n_pad // tile_m, n_pad // tile_k)

    if x_resident:
        # Full activation matrix VMEM-resident; block index never changes so it
        # is DMA'd once and sliced in-kernel.
        x_spec = pl.BlockSpec((n_pad, _FP), lambda i, k: (0, 0))
    else:
        x_spec = pl.BlockSpec((tile_k, _FP), lambda i, k: (k, 0))

    kernel = functools.partial(_gcn_layer_kernel, relu=relu, tile_k=tile_k,
                               x_resident=x_resident)

    vmem_limit = _vmem_limit_bytes(
        n_pad, tile_m, tile_k,
        jnp.dtype(a_dtype).itemsize, jnp.dtype(out_dtype).itemsize, x_resident)

    return pl.pallas_call(
        kernel,
        out_shape=jax.ShapeDtypeStruct((n_pad, _FP), out_dtype),
        grid_spec=pltpu.PrefetchScalarGridSpec(
            num_scalar_prefetch=0,
            grid=grid,
            in_specs=[
                pl.BlockSpec((tile_m, tile_k), lambda i, k: (i, k)),  # A tile
                x_spec,                                               # X / H1
                pl.BlockSpec((_FP, _FP), lambda i, k: (0, 0)),        # W (bf16)
                pl.BlockSpec((1, _FP), lambda i, k: (0, 0)),          # b (f32)
            ],
            out_specs=pl.BlockSpec((tile_m, _FP), lambda i, k: (i, 0)),
            scratch_shapes=[pltpu.VMEM((tile_m, _FP), jnp.float32)],
        ),
        compiler_params=pltpu.CompilerParams(
            dimension_semantics=("parallel", "arbitrary"),
            vmem_limit_bytes=vmem_limit,
        ),
    )


# ------------------------------- JAX glue ---------------------------------- #
def _round_up(v, m):
    return -(-v // m) * m


def choose_tiling(n):
    """(n_pad, tile_m, tile_k) — MXU-aligned; single tile for small graphs."""
    if n <= 512:
        n_pad = max(256, _round_up(n, 256))
        return n_pad, n_pad, n_pad
    n_pad = _round_up(n, max(_TILE_M, _TILE_K))
    return n_pad, _TILE_M, _TILE_K


def _pad_to(x, rows, cols):
    r, c = x.shape
    return jnp.pad(x, ((0, rows - r), (0, cols - c)))


def _dense_normalized_adjacency(edge_index, num_nodes):
    """PyG gcn_norm (add_remaining_self_loops + D^-1/2 (A+I) D^-1/2), f32."""
    src, dst = edge_index[0], edge_index[1]
    adj = jnp.zeros((num_nodes, num_nodes), jnp.float32).at[dst, src].add(1.0)
    diag = jnp.diagonal(adj)
    # Only add a self loop where none exists (matches add_remaining_self_loops).
    adj = adj + jnp.diag(jnp.where(diag > 0, 0.0, 1.0))
    deg = adj.sum(axis=1)
    dinv = jnp.where(deg > 0, jax.lax.rsqrt(deg), 0.0)
    return dinv[:, None] * adj * dinv[None, :]


def build_normalized_adjacency(edge_index, num_nodes, n_pad, *, dtype="int8"):
    """Normalized adjacency padded to (n_pad, n_pad), stored compactly.

    Returns (a_stored, a_scale): a_stored is int8 (global-scale quantized) or
    bf16; a_scale dequantizes it (folded into W by gcn_forward).  Build once
    per graph and reuse across forward calls via gcn_forward(adjacency=...).
    """
    a = _pad_to(_dense_normalized_adjacency(edge_index, num_nodes), n_pad, n_pad)
    if dtype == "int8":
        a_max = jnp.maximum(jnp.max(a), jnp.float32(1e-12))
        scale = a_max / 127.0
        q = jnp.clip(jnp.round(a / scale), 0, 127).astype(jnp.int8)
        return q, scale
    return a.astype(jnp.bfloat16), jnp.float32(1.0)


def gcn_forward(x, edge_index, params, *, task_level="node", batch=None,
                num_graphs=1, a_dtype="int8", adjacency=None):
    """Forward pass matching the PyTorch GCN module.

    x:          (N, 3) float32 node features
    edge_index: (2, E) int32 [src; dst]
    params:     dict with w1 (3,16), b1 (16,), w2 (16,7), b2 (7,)
    num_graphs: static number of graphs for the graph-level pooling branch.
    adjacency:  optional cached result of build_normalized_adjacency.
    """
    n = x.shape[0]
    f_out = params["w2"].shape[1]
    n_pad, tile_m, tile_k = choose_tiling(n)

    if adjacency is None:
        adjacency = build_normalized_adjacency(edge_index, n, n_pad, dtype=a_dtype)
    a_stored, a_scale = adjacency

    x_resident = n_pad * _FP * 2 <= _X_RESIDENT_MAX_BYTES

    # bf16 activation stream; int8 dequant scale folded into the tiny weights.
    x_p = _pad_to(x.astype(jnp.float32), n_pad, _FP).astype(jnp.bfloat16)
    w1_p = _pad_to(params["w1"].astype(jnp.float32) * a_scale, _FP, _FP).astype(jnp.bfloat16)
    w2_p = _pad_to(params["w2"].astype(jnp.float32) * a_scale, _FP, _FP).astype(jnp.bfloat16)
    b1_p = _pad_to(params["b1"][None, :].astype(jnp.float32), 1, _FP)
    b2_p = _pad_to(params["b2"][None, :].astype(jnp.float32), 1, _FP)

    # Layer 1: H1 = relu(A @ X @ W1 + b1)   (bf16 output feeds layer 2)
    layer1 = _make_layer_call(n_pad, tile_m, tile_k, relu=True,
                              out_dtype=jnp.bfloat16, a_dtype=a_stored.dtype,
                              x_resident=x_resident)
    h1_p = layer1(a_stored, x_p, w1_p, b1_p)

    # Layer 2: H2 = A @ H1 @ W2 + b2        (f32 output)
    layer2 = _make_layer_call(n_pad, tile_m, tile_k, relu=False,
                              out_dtype=jnp.float32, a_dtype=a_stored.dtype,
                              x_resident=x_resident)
    out_p = layer2(a_stored, h1_p, w2_p, b2_p)

    out = out_p[:n, :f_out]

    if task_level == "graph":
        # global_add_pool: static num_graphs -> jittable, no host sync.
        if batch is None:
            batch = jnp.zeros((n,), jnp.int32)
        out = jnp.zeros((num_graphs, f_out), out.dtype).at[batch].add(out)
    return out


def init_params(key):
    k1, k2 = jax.random.split(key)
    w1 = jax.random.uniform(k1, (3, 16), jnp.float32, -0.5, 0.5)
    w2 = jax.random.uniform(k2, (16, 7), jnp.float32, -0.25, 0.25)
    b1 = jnp.zeros((16,), jnp.float32)
    b2 = jnp.zeros((7,), jnp.float32)
    return {"w1": w1, "b1": b1, "w2": w2, "b2": b2}


def _gcn_reference(x, edge_index, params):
    """Pure-JAX f32 reference (PyG semantics)."""
    a = _dense_normalized_adjacency(edge_index, x.shape[0])
    h1 = jnp.maximum(a @ (x @ params["w1"]) + params["b1"], 0.0)
    return a @ (h1 @ params["w2"]) + params["b2"]


if __name__ == "__main__":
    key = jax.random.PRNGKey(0)
    kx, kp, ke, kx2 = jax.random.split(key, 4)
    params = init_params(kp)

    # ------------- Test 1: tiny ring graph (8 nodes), single-tile path -------------
    n = 8
    x = jax.random.normal(kx, (n, 3), jnp.float32)
    src = jnp.arange(n, dtype=jnp.int32)
    dst = (src + 1) % n
    edge_index = jnp.stack([jnp.concatenate([src, dst]),
                            jnp.concatenate([dst, src])], axis=0)  # (2, 16)
    ref = _gcn_reference(x, edge_index, params)

    # bf16 adjacency path (cache the adjacency and reuse it across calls)
    n_pad, _, _ = choose_tiling(n)
    adj_bf16 = build_normalized_adjacency(edge_index, n, n_pad, dtype="bf16")
    out_bf16 = gcn_forward(x, edge_index, params, a_dtype="bf16", adjacency=adj_bf16)
    jax.block_until_ready(out_bf16)
    assert out_bf16.shape == (n, 7)
    assert jnp.allclose(out_bf16, ref, atol=3e-2, rtol=3e-2), "bf16 path mismatch"

    # int8 adjacency path (global-scale quantized A)
    out_int8 = gcn_forward(x, edge_index, params, a_dtype="int8")
    jax.block_until_ready(out_int8)
    assert jnp.allclose(out_int8, ref, atol=5e-2, rtol=5e-2), "int8 path mismatch"

    # graph-level task (global_add_pool branch), single graph, static num_graphs
    batch = jnp.zeros((n,), jnp.int32)
    out_graph = gcn_forward(x, edge_index, params, task_level="graph",
                            batch=batch, num_graphs=1, a_dtype="bf16",
                            adjacency=adj_bf16)
    jax.block_until_ready(out_graph)
    assert out_graph.shape == (1, 7)
    assert jnp.allclose(out_graph, ref.sum(axis=0, keepdims=True),
                        atol=5e-2, rtol=5e-2), "graph pooling mismatch"

    # ------- Test 2: medium random graph — multi row-tile + multi-k accumulation -----
    n2, e2 = 1200, 4800
    x2 = jax.random.normal(kx2, (n2, 3), jnp.float32)
    ei2 = jax.random.randint(ke, (2, e2), 0, n2, dtype=jnp.int32)
    ref2 = _gcn_reference(x2, ei2, params)
    out2 = gcn_forward(x2, ei2, params, a_dtype="int8")
    jax.block_until_ready(out2)
    assert out2.shape == (n2, 7)
    assert jnp.allclose(out2, ref2, atol=1e-1, rtol=1e-1), "medium graph mismatch"

    print("KERNEL_OK")
</pallas_src>

<mosaic_0001>
module attributes {stable_mosaic.version = 11 : i64} {
  func.func @_gcn_layer_kernel(%arg0: i32, %arg1: i32, %arg2: memref<256x256xbf16, #tpu.memory_space<vmem>>, %arg3: memref<256x128xbf16, #tpu.memory_space<vmem>>, %arg4: memref<128x128xbf16, #tpu.memory_space<vmem>>, %arg5: memref<1x128xf32, #tpu.memory_space<vmem>>, %arg6: memref<256x128xbf16, #tpu.memory_space<vmem>>, %arg7: memref<256x128xf32, #tpu.memory_space<vmem>>) attributes {dimension_semantics = [#tpu.dimension_semantics<parallel>, #tpu.dimension_semantics<arbitrary>], iteration_bounds = array<i64: 1, 1>, scalar_prefetch = 0 : i64, scratch_operands = 1 : i64, tpu.core_type = #tpu.core_type<tc>, window_params = [{transform_indices = @transform_0, window_bounds = array<i64: 256, 256>}, {pipeline_mode = #tpu.pipeline_mode<synchronous>, transform_indices = @transform_1, window_bounds = array<i64: 256, 128>}, {pipeline_mode = #tpu.pipeline_mode<synchronous>, transform_indices = @transform_2, window_bounds = array<i64: 128, 128>}, {pipeline_mode = #tpu.pipeline_mode<synchronous>, transform_indices = @transform_3, window_bounds = array<i64: 1, 128>}, {transform_indices = @transform_4, window_bounds = array<i64: 256, 128>}]} {
    %c256_i32 = arith.constant 256 : i32
    %0 = arith.muli %arg1, %c256_i32 : i32
    %1 = tpu.assume_multiple %0, 256 : i32
    %2 = arith.index_cast %1 : i32 to index
    %c0 = arith.constant 0 : index
    %3 = vector.load %arg3[%2, %c0] : memref<256x128xbf16, #tpu.memory_space<vmem>>, vector<256x128xbf16>
    %c0_0 = arith.constant 0 : index
    %c0_1 = arith.constant 0 : index
    %4 = vector.load %arg2[%c0_0, %c0_1] : memref<256x256xbf16, #tpu.memory_space<vmem>>, vector<256x256xbf16>
    %cst = arith.constant dense<0.000000e+00> : vector<256x128xf32>
    %5 = tpu.matmul %4, %3, %cst {dimension_numbers = #tpu.dot_dimension_numbers<[1], [0], [0], [1], [0, 0, 1, 1], [], []>} : vector<256x256xbf16>, vector<256x128xbf16>, vector<256x128xf32> -> vector<256x128xf32>
    %c0_i32 = arith.constant 0 : i32
    %6 = arith.cmpi eq, %arg1, %c0_i32 : i32
    %7 = arith.extui %6 : i1 to i32
    %c0_i32_2 = arith.constant 0 : i32
    %8 = arith.cmpi ne, %7, %c0_i32_2 : i32
    scf.if %8 {
      %c0_7 = arith.constant 0 : index
      %c0_8 = arith.constant 0 : index
      %15 = vector.load %arg7[%c0_7, %c0_8] : memref<256x128xf32, #tpu.memory_space<vmem>>, vector<256x128xf32>
      tpu.vector_store %arg7[%c0_7, %c0_8], %5 {strides = array<i32>} : memref<256x128xf32, #tpu.memory_space<vmem>>, vector<256x128xf32>,
    } else {
    }
    %c0_i32_3 = arith.constant 0 : i32
    %9 = arith.cmpi sgt, %arg1, %c0_i32_3 : i32
    %10 = arith.extui %9 : i1 to i32
    %c0_i32_4 = arith.constant 0 : i32
    %11 = arith.cmpi ne, %10, %c0_i32_4 : i32
    scf.if %11 {
      %c0_7 = arith.constant 0 : index
      %c0_8 = arith.constant 0 : index
      %15 = vector.load %arg7[%c0_7, %c0_8] : memref<256x128xf32, #tpu.memory_space<vmem>>, vector<256x128xf32>
      %16 = arith.addf %15, %5 : vector<256x128xf32>
      %c0_9 = arith.constant 0 : index
      %c0_10 = arith.constant 0 : index
      %17 = vector.load %arg7[%c0_9, %c0_10] : memref<256x128xf32, #tpu.memory_space<vmem>>, vector<256x128xf32>
      tpu.vector_store %arg7[%c0_9, %c0_10], %16 {strides = array<i32>} : memref<256x128xf32, #tpu.memory_space<vmem>>, vector<256x128xf32>,
    } else {
    }
    %c0_i32_5 = arith.constant 0 : i32
    %12 = arith.cmpi eq, %arg1, %c0_i32_5 : i32
    %13 = arith.extui %12 : i1 to i32
    %c0_i32_6 = arith.constant 0 : i32
    %14 = arith.cmpi ne, %13, %c0_i32_6 : i32
    scf.if %14 {
      %c0_7 = arith.constant 0 : index
      %c0_8 = arith.constant 0 : index
      %15 = vector.load %arg7[%c0_7, %c0_8] : memref<256x128xf32, #tpu.memory_space<vmem>>, vector<256x128xf32>
      %16 = arith.truncf %15 : vector<256x128xf32> to vector<256x128xbf16>
      %c0_9 = arith.constant 0 : index
      %c0_10 = arith.constant 0 : index
      %17 = vector.load %arg4[%c0_9, %c0_10] : memref<128x128xbf16, #tpu.memory_space<vmem>>, vector<128x128xbf16>
      %cst_11 = arith.constant dense<0.000000e+00> : vector<256x128xf32>
      %18 = tpu.matmul %16, %17, %cst_11 {dimension_numbers = #tpu.dot_dimension_numbers<[1], [0], [0], [1], [0, 0, 1, 1], [], []>} : vector<256x128xbf16>, vector<128x128xbf16>, vector<256x128xf32> -> vector<256x128xf32>
      %c0_12 = arith.constant 0 : index
      %c0_13 = arith.constant 0 : index
      %19 = vector.load %arg5[%c0_12, %c0_13] : memref<1x128xf32, #tpu.memory_space<vmem>>, vector<1x128xf32>
      %20 = vector.broadcast %19 : vector<1x128xf32> to vector<256x128xf32>
      %21 = arith.addf %18, %20 : vector<256x128xf32>
      %cst_14 = arith.constant 0.000000e+00 : f32
      %22 = vector.broadcast %cst_14 : f32 to vector<256x128xf32>
      %23 = arith.maximumf %21, %22 : vector<256x128xf32>
      %24 = arith.truncf %23 : vector<256x128xf32> to vector<256x128xbf16>
      %c0_15 = arith.constant 0 : index
      %c0_16 = arith.constant 0 : index
      %25 = vector.load %arg6[%c0_15, %c0_16] : memref<256x128xbf16, #tpu.memory_space<vmem>>, vector<256x128xbf16>
      tpu.vector_store %arg6[%c0_15, %c0_16], %24 {strides = array<i32>} : memref<256x128xbf16, #tpu.memory_space<vmem>>, vector<256x128xbf16>,
    } else {
    }
    return
  }
  func.func @transform_0(%arg0: i32, %arg1: i32) -> (i32, i32) {
    %c0_i32 = arith.constant 0 : i32
    return %arg0, %arg1 : i32, i32
  }
  func.func @transform_1(%arg0: i32, %arg1: i32) -> (i32, i32) {
    %c0_i32 = arith.constant 0 : i32
    %c0_i32_0 = arith.constant 0 : i32
    %c0_i32_1 = arith.constant 0 : i32
    return %c0_i32, %c0_i32_0 : i32, i32
  }
  func.func @transform_2(%arg0: i32, %arg1: i32) -> (i32, i32) {
    %c0_i32 = arith.constant 0 : i32
    %c0_i32_0 = arith.constant 0 : i32
    %c0_i32_1 = arith.constant 0 : i32
    return %c0_i32, %c0_i32_0 : i32, i32
  }
  func.func @transform_3(%arg0: i32, %arg1: i32) -> (i32, i32) {
    %c0_i32 = arith.constant 0 : i32
    %c0_i32_0 = arith.constant 0 : i32
    %c0_i32_1 = arith.constant 0 : i32
    return %c0_i32, %c0_i32_0 : i32, i32
  }
  func.func @transform_4(%arg0: i32, %arg1: i32) -> (i32, i32) {
    %c0_i32 = arith.constant 0 : i32
    %c0_i32_0 = arith.constant 0 : i32
    return %arg0, %c0_i32 : i32, i32
  }
}

</mosaic_0001>

<llo_original>
// kernel: tpu_custom_call.1
$region0: #{tpu_custom_call.1}
  #allocation0 [shape = 'u32[]', space=smem, size = 0x4, offset = 0x4, fixed_abs, tag = 'smem constant byte address 0x4 - core index']
  #allocation1 [shape = 'u32[72,128]{1,0:T(1,128)}', space=vmem, size = 0x9000, scoped, tag = 'internal scratch']
  #allocation2 [shape = 'f32[256,128]{1,0:T(8,128)}', space=vmem, size = 0x20000, scoped, tag = 'scratch operand']
  %s0 = inlined_call_operand.hbm [shape: bf16[256,256], index: 0, kind: input, shape index: {}]
  %s1 = inlined_call_operand.hbm [shape: bf16[256,128], index: 1, kind: input, shape index: {}]
  %s2 = inlined_call_operand.hbm [shape: bf16[128,128], index: 2, kind: input, shape index: {}]
  %s3 = inlined_call_operand.vmem [shape: f32[1,128], index: 3, kind: input, shape index: {}]
  %s4 = inlined_call_operand.hbm [shape: bf16[256,128], index: 4, kind: output, shape index: {}]
  %s5 = sld [smem:[#allocation0]]
  $region50: #{tpu_custom_call.1} parent=0
    _
  %s7 = ssub.s32 1, %s5
  %s8 = scalar_select 0, %s7, %s5
  $region1: #{tpu_custom_call.1} parent=0
    #allocation3 [shape = 'u8[131072]{0}', space=vmem, size = 0x20000, scoped, tag = 'input window, operand 0, single buffered']
    #allocation4 [shape = 's32[1]{0}', space=sflag, size = 0x4, scoped, tag = 'scoped memory for tpu_custom_call.1']
    #allocation5 [shape = 's32[1]{0}', space=sflag, size = 0x4, scoped, tag = 'scoped memory for tpu_custom_call.1']
    #allocation6 [shape = 'u8[65536]{0}', space=vmem, size = 0x10000, scoped, tag = 'input window, operand 1, single buffered']
    #allocation7 [shape = 's32[1]{0}', space=sflag, size = 0x4, scoped, tag = 'scoped memory for tpu_custom_call.1']
    #allocation8 [shape = 'u8[32768]{0}', space=vmem, size = 0x8000, scoped, tag = 'input window, operand 2, single buffered']
    #allocation9 [shape = 'u8[65536]{0}', space=vmem, size = 0x10000, scoped, tag = 'output window, operand 0, single buffered']
    %9 = vsyncpa [#allocation4], 0
    %10 = vsyncpa [#allocation7], 0
    %11 = vsyncpa [#allocation5], 0
    // Predicated region
    $region2: #{tpu_custom_call.1} parent=1 // pred_check
      _
    $region3: #{tpu_custom_call.1} parent=1 // pred_check_branch
      %13 = sbr.rel (0) target = $region5
    $region4: #{tpu_custom_call.1} parent=1 // pred_region
      %15 = vsyncadd [#allocation4], 0
      %s16 = sshll.u32 %s0, 4
      %s17 = int_to_ptr.hbm [resolvable:$true] %s16
      %s18 = sshll.u32 [#allocation3], 4
      %s19 = int_to_ptr.vmem [resolvable:$true] %s18
      %24 = dma.hbm_to_vmem [thread:$0]  %s17, 4096, %s19, [#allocation4], 128, 128, 8
    $region5: #{tpu_custom_call.1} parent=1 // pred_fallthru
      _
    // Predicated region
    $region6: #{tpu_custom_call.1} parent=1 // pred_check
      _
    $region7: #{tpu_custom_call.1} parent=1 // pred_check_branch
      %26 = sbr.rel (0) target = $region9
    $region8: #{tpu_custom_call.1} parent=1 // pred_region
      %28 = vsyncadd [#allocation7], 0
      %s29 = sshll.u32 %s1, 4
      %s30 = int_to_ptr.hbm [resolvable:$true] %s29
      %s31 = sshll.u32 [#allocation6], 4
      %s32 = int_to_ptr.vmem [resolvable:$true] %s31
      %37 = dma.hbm_to_vmem [thread:$0]  %s30, 2048, %s32, [#allocation7], 64, 64, 4
    $region9: #{tpu_custom_call.1} parent=1 // pred_fallthru
      _
    // Predicated region
    $region10: #{tpu_custom_call.1} parent=1 // pred_check
      _
    $region11: #{tpu_custom_call.1} parent=1 // pred_check_branch
      %39 = sbr.rel (0) target = $region13
    $region12: #{tpu_custom_call.1} parent=1 // pred_region
      %41 = vsyncadd [#allocation7], 0
      %s42 = sshll.u32 %s2, 4
      %s43 = int_to_ptr.hbm [resolvable:$true] %s42
      %s44 = sshll.u32 [#allocation8], 4
      %s45 = int_to_ptr.vmem [resolvable:$true] %s44
      %50 = dma.hbm_to_vmem [thread:$0]  %s43, 1024, %s45, [#allocation7], 64, 64, 4
    $region13: #{tpu_custom_call.1} parent=1 // pred_fallthru
      _
    // Predicated region
    $region14: #{tpu_custom_call.1} parent=1 // pred_check
      _
    $region15: #{tpu_custom_call.1} parent=1 // pred_check_branch
      %52 = sbr.rel (0) target = $region17
    $region16: #{tpu_custom_call.1} parent=1 // pred_region
      _
    $region17: #{tpu_custom_call.1} parent=1 // pred_fallthru
      _
    // Predicated region
    $region18: #{tpu_custom_call.1} parent=1 // pred_check
      _
    $region19: #{tpu_custom_call.1} parent=1 // pred_check_branch
      %54 = sbr.rel (0) target = $region21
    $region20: #{tpu_custom_call.1} parent=1 // pred_region
      %56 = dma.done [#allocation4], 4096
    $region21: #{tpu_custom_call.1} parent=1 // pred_fallthru
      _
    // Predicated region
    $region22: #{tpu_custom_call.1} parent=1 // pred_check
      _
    $region23: #{tpu_custom_call.1} parent=1 // pred_check_branch
      %58 = sbr.rel (0) target = $region25
    $region24: #{tpu_custom_call.1} parent=1 // pred_region
      %60 = dma.done [#allocation7], 2048
    $region25: #{tpu_custom_call.1} parent=1 // pred_fallthru
      _
    // Predicated region
    $region26: #{tpu_custom_call.1} parent=1 // pred_check
      _
    $region27: #{tpu_custom_call.1} parent=1 // pred_check_branch
      %62 = sbr.rel (0) target = $region29
    $region28: #{tpu_custom_call.1} parent=1 // pred_region
      %64 = dma.done [#allocation7], 1024
    $region29: #{tpu_custom_call.1} parent=1 // pred_fallthru
      _
    %s65 = smul.u32 0, 256
    %s66 = sshra.s32 %s65, 3
    %s67 = sand.u32 %s65, 7
    %s68 = smul.addr %s66, 4
    %s69 = scalar_lea.vmem [#allocation6], %s68
    %v70 = vld [vmem:[%s69] sm:$0xf]
    %v71 = vld [vmem:[%s69 + $0x4] sm:$0xf]
    %v72 = vld [vmem:[%s69 + $0x8] sm:$0xf]
    %v73 = vld [vmem:[%s69 + $0xc] sm:$0xf]
    %v74 = vld [vmem:[%s69 + $0x10] sm:$0xf]
    %v75 = vld [vmem:[%s69 + $0x14] sm:$0xf]
    %v76 = vld [vmem:[%s69 + $0x18] sm:$0xf]
    %v77 = vld [vmem:[%s69 + $0x1c] sm:$0xf]
    %v78 = vld [vmem:[%s69 + $0x20] sm:$0xf]
    %v79 = vld [vmem:[%s69 + $0x24] sm:$0xf]
    %v80 = vld [vmem:[%s69 + $0x28] sm:$0xf]
    %v81 = vld [vmem:[%s69 + $0x2c] sm:$0xf]
    %v82 = vld [vmem:[%s69 + $0x30] sm:$0xf]
    %v83 = vld [vmem:[%s69 + $0x34] sm:$0xf]
    %v84 = vld [vmem:[%s69 + $0x38] sm:$0xf]
    %v85 = vld [vmem:[%s69 + $0x3c] sm:$0xf]
    %v86 = vld [vmem:[%s69 + $0x40] sm:$0xf]
    %v87 = vld [vmem:[%s69 + $0x44] sm:$0xf]
    %v88 = vld [vmem:[%s69 + $0x48] sm:$0xf]
    %v89 = vld [vmem:[%s69 + $0x4c] sm:$0xf]
    %v90 = vld [vmem:[%s69 + $0x50] sm:$0xf]
    %v91 = vld [vmem:[%s69 + $0x54] sm:$0xf]
    %v92 = vld [vmem:[%s69 + $0x58] sm:$0xf]
    %v93 = vld [vmem:[%s69 + $0x5c] sm:$0xf]
    %v94 = vld [vmem:[%s69 + $0x60] sm:$0xf]
    %v95 = vld [vmem:[%s69 + $0x64] sm:$0xf]
    %v96 = vld [vmem:[%s69 + $0x68] sm:$0xf]
    %v97 = vld [vmem:[%s69 + $0x6c] sm:$0xf]
    %v98 = vld [vmem:[%s69 + $0x70] sm:$0xf]
    %v99 = vld [vmem:[%s69 + $0x74] sm:$0xf]
    %v100 = vld [vmem:[%s69 + $0x78] sm:$0xf]
    %v101 = vld [vmem:[%s69 + $0x7c] sm:$0xf]
    %v102 = vld [vmem:[#allocation3] sm:$0xff]
    %v103 = vld [vmem:[#allocation3 + $0x8] sm:$0xff]
    %v104 = vld [vmem:[#allocation3 + $0x10] sm:$0xff]
    %v105 = vld [vmem:[#allocation3 + $0x18] sm:$0xff]
    %v106 = vld [vmem:[#allocation3 + $0x20] sm:$0xff]
    %v107 = vld [vmem:[#allocation3 + $0x28] sm:$0xff]
    %v108 = vld [vmem:[#allocation3 + $0x30] sm:$0xff]
    %v109 = vld [vmem:[#allocation3 + $0x38] sm:$0xff]
    %v110 = vld [vmem:[#allocation3 + $0x40] sm:$0xff]
    %v111 = vld [vmem:[#allocation3 + $0x48] sm:$0xff]
    %v112 = vld [vmem:[#allocation3 + $0x50] sm:$0xff]
    %v113 = vld [vmem:[#allocation3 + $0x58] sm:$0xff]
    %v114 = vld [vmem:[#allocation3 + $0x60] sm:$0xff]
    %v115 = vld [vmem:[#allocation3 + $0x68] sm:$0xff]
    %v116 = vld [vmem:[#allocation3 + $0x70] sm:$0xff]
    %v117 = vld [vmem:[#allocation3 + $0x78] sm:$0xff]
    %v118 = vld [vmem:[#allocation3 + $0x80] sm:$0xff]
    %v119 = vld [vmem:[#allocation3 + $0x88] sm:$0xff]
    %v120 = vld [vmem:[#allocation3 + $0x90] sm:$0xff]
    %v121 = vld [vmem:[#allocation3 + $0x98] sm:$0xff]
    %v122 = vld [vmem:[#allocation3 + $0xa0] sm:$0xff]
    %v123 = vld [vmem:[#allocation3 + $0xa8] sm:$0xff]
    %v124 = vld [vmem:[#allocation3 + $0xb0] sm:$0xff]
    %v125 = vld [vmem:[#allocation3 + $0xb8] sm:$0xff]
    %v126 = vld [vmem:[#allocation3 + $0xc0] sm:$0xff]
    %v127 = vld [vmem:[#allocation3 + $0xc8] sm:$0xff]
    %v128 = vld [vmem:[#allocation3 + $0xd0] sm:$0xff]
    %v129 = vld [vmem:[#allocation3 + $0xd8] sm:$0xff]
    %v130 = vld [vmem:[#allocation3 + $0xe0] sm:$0xff]
    %v131 = vld [vmem:[#allocation3 + $0xe8] sm:$0xff]
    %v132 = vld [vmem:[#allocation3 + $0xf0] sm:$0xff]
    %v133 = vld [vmem:[#allocation3 + $0xf8] sm:$0xff]
    %v166 = vunpack.c.l.b16 %v102
    %v167 = vunpack.c.h.b16 %v102
    %v168 = vunpack.c.l.b16 %v103
    %v169 = vunpack.c.h.b16 %v103
    %v170 = vunpack.c.l.b16 %v104
    %v171 = vunpack.c.h.b16 %v104
    %v172 = vunpack.c.l.b16 %v105
    %v173 = vunpack.c.h.b16 %v105
    %v174 = vunpack.c.l.b16 %v106
    %v175 = vunpack.c.h.b16 %v106
    %v176 = vunpack.c.l.b16 %v107
    %v177 = vunpack.c.h.b16 %v107
    %v178 = vunpack.c.l.b16 %v108
    %v179 = vunpack.c.h.b16 %v108
    %v180 = vunpack.c.l.b16 %v109
    %v181 = vunpack.c.h.b16 %v109
    %v182 = vunpack.c.l.b16 %v110
    %v183 = vunpack.c.h.b16 %v110
    %v184 = vunpack.c.l.b16 %v111
    %v185 = vunpack.c.h.b16 %v111
    %v186 = vunpack.c.l.b16 %v112
    %v187 = vunpack.c.h.b16 %v112
    %v188 = vunpack.c.l.b16 %v113
    %v189 = vunpack.c.h.b16 %v113
    %v190 = vunpack.c.l.b16 %v114
    %v191 = vunpack.c.h.b16 %v114
    %v192 = vunpack.c.l.b16 %v115
    %v193 = vunpack.c.h.b16 %v115
    %v194 = vunpack.c.l.b16 %v116
    %v195 = vunpack.c.h.b16 %v116
    %v196 = vunpack.c.l.b16 %v117
    %v197 = vunpack.c.h.b16 %v117
    %v198 = vunpack.c.l.b16 %v118
    %v199 = vunpack.c.h.b16 %v118
    %v200 = vunpack.c.l.b16 %v119
    %v201 = vunpack.c.h.b16 %v119
    %v202 = vunpack.c.l.b16 %v120
    %v203 = vunpack.c.h.b16 %v120
    %v204 = vunpack.c.l.b16 %v121
    %v205 = vunpack.c.h.b16 %v121
    %v206 = vunpack.c.l.b16 %v122
    %v207 = vunpack.c.h.b16 %v122
    %v208 = vunpack.c.l.b16 %v123
    %v209 = vunpack.c.h.b16 %v123
    %v210 = vunpack.c.l.b16 %v124
    %v211 = vunpack.c.h.b16 %v124
    %v212 = vunpack.c.l.b16 %v125
    %v213 = vunpack.c.h.b16 %v125
    %v214 = vunpack.c.l.b16 %v126
    %v215 = vunpack.c.h.b16 %v126
    %v216 = vunpack.c.l.b16 %v127
    %v217 = vunpack.c.h.b16 %v127
    %v218 = vunpack.c.l.b16 %v128
    %v219 = vunpack.c.h.b16 %v128
    %v220 = vunpack.c.l.b16 %v129
    %v221 = vunpack.c.h.b16 %v129
    %v222 = vunpack.c.l.b16 %v130
    %v223 = vunpack.c.h.b16 %v130
    %v224 = vunpack.c.l.b16 %v131
    %v225 = vunpack.c.h.b16 %v131
    %v226 = vunpack.c.l.b16 %v132
    %v227 = vunpack.c.h.b16 %v132
    %v228 = vunpack.c.l.b16 %v133
    %v229 = vunpack.c.h.b16 %v133
    %v230 = vpack.c.b16 %v168, %v166
    %v231 = vpack.c.b16 %v169, %v167
    %v232 = vpack.c.b16 %v172, %v170
    %v233 = vpack.c.b16 %v173, %v171
    %v234 = vpack.c.b16 %v176, %v174
    %v235 = vpack.c.b16 %v177, %v175
    %v236 = vpack.c.b16 %v180, %v178
    %v237 = vpack.c.b16 %v181, %v179
    %v238 = vpack.c.b16 %v184, %v182
    %v239 = vpack.c.b16 %v185, %v183
    %v240 = vpack.c.b16 %v188, %v186
    %v241 = vpack.c.b16 %v189, %v187
    %v242 = vpack.c.b16 %v192, %v190
    %v243 = vpack.c.b16 %v193, %v191
    %v244 = vpack.c.b16 %v196, %v194
    %v245 = vpack.c.b16 %v197, %v195
    %v246 = vpack.c.b16 %v200, %v198
    %v247 = vpack.c.b16 %v201, %v199
    %v248 = vpack.c.b16 %v204, %v202
    %v249 = vpack.c.b16 %v205, %v203
    %v250 = vpack.c.b16 %v208, %v206
    %v251 = vpack.c.b16 %v209, %v207
    %v252 = vpack.c.b16 %v212, %v210
    %v253 = vpack.c.b16 %v213, %v211
    %v254 = vpack.c.b16 %v216, %v214
    %v255 = vpack.c.b16 %v217, %v215
    %v256 = vpack.c.b16 %v220, %v218
    %v257 = vpack.c.b16 %v221, %v219
    %v258 = vpack.c.b16 %v224, %v222
    %v259 = vpack.c.b16 %v225, %v223
    %v260 = vpack.c.b16 %v228, %v226
    %v261 = vpack.c.b16 %v229, %v227
    %v326 = vunpack.c.l.b16 %v70
    %v327 = vunpack.c.l.b16 %v71
    %v328 = vunpack.c.l.b16 %v72
    %v329 = vunpack.c.l.b16 %v73
    %v330 = vunpack.c.l.b16 %v74
    %v331 = vunpack.c.l.b16 %v75
    %v332 = vunpack.c.l.b16 %v76
    %v333 = vunpack.c.l.b16 %v77
    %v334 = vunpack.c.l.b16 %v78
    %v335 = vunpack.c.l.b16 %v79
    %v336 = vunpack.c.l.b16 %v80
    %v337 = vunpack.c.l.b16 %v81
    %v338 = vunpack.c.l.b16 %v82
    %v339 = vunpack.c.l.b16 %v83
    %v340 = vunpack.c.l.b16 %v84
    %v341 = vunpack.c.l.b16 %v85
    %v342 = vunpack.c.l.b16 %v86
    %v343 = vunpack.c.l.b16 %v87
    %v344 = vunpack.c.l.b16 %v88
    %v345 = vunpack.c.l.b16 %v89
    %v346 = vunpack.c.l.b16 %v90
    %v347 = vunpack.c.l.b16 %v91
    %v348 = vunpack.c.l.b16 %v92
    %v349 = vunpack.c.l.b16 %v93
    %v350 = vunpack.c.l.b16 %v94
    %v351 = vunpack.c.l.b16 %v95
    %v352 = vunpack.c.l.b16 %v96
    %v353 = vunpack.c.l.b16 %v97
    %v354 = vunpack.c.l.b16 %v98
    %v355 = vunpack.c.l.b16 %v99
    %v356 = vunpack.c.l.b16 %v100
    %v357 = vunpack.c.l.b16 %v101
    %v358 = vpack.c.b16 %v327, %v326
    %v359 = vpack.c.b16 %v329, %v328
    %v360 = vpack.c.b16 %v331, %v330
    %v361 = vpack.c.b16 %v333, %v332
    %v362 = vpack.c.b16 %v335, %v334
    %v363 = vpack.c.b16 %v337, %v336
    %v364 = vpack.c.b16 %v339, %v338
    %v365 = vpack.c.b16 %v341, %v340
    %v366 = vpack.c.b16 %v343, %v342
    %v367 = vpack.c.b16 %v345, %v344
    %v368 = vpack.c.b16 %v347, %v346
    %v369 = vpack.c.b16 %v349, %v348
    %v370 = vpack.c.b16 %v351, %v350
    %v371 = vpack.c.b16 %v353, %v352
    %v372 = vpack.c.b16 %v355, %v354
    %v373 = vpack.c.b16 %v357, %v356
    %390 = vmatpush.bf16.msra.mxu0 %v365
    %391 = vmatpush.bf16.msra.mxu0 %v364
    %392 = vmatpush.bf16.msra.mxu0 %v363
    %393 = vmatpush.bf16.msra.mxu0 %v362
    %394 = vmatpush.bf16.msra.mxu0 %v361
    %395 = vmatpush.bf16.msra.mxu0 %v360
    %396 = vmatpush.bf16.msra.mxu0 %v359
    %397 = vmatpush.bf16.msra.mxu0 %v358
    %398 = vmatmul.bf16.gmra.mxu0 %v230
    %v399 = vpop.f32.mrf.mxu0
    %v400 = vadd.f32 0.0, %v399
    %v401 = vpop.f32.mrf.mxu0
    %v402 = vadd.f32 0.0, %v401
    %403 = vmatmul.bf16.gmra.mxu0 %v232
    %v404 = vpop.f32.mrf.mxu0
    %v405 = vadd.f32 0.0, %v404
    %v406 = vpop.f32.mrf.mxu0
    %v407 = vadd.f32 0.0, %v406
    %408 = vmatmul.bf16.gmra.mxu0 %v234
    %v409 = vpop.f32.mrf.mxu0
    %v410 = vadd.f32 0.0, %v409
    %v411 = vpop.f32.mrf.mxu0
    %v412 = vadd.f32 0.0, %v411
    %413 = vmatmul.bf16.gmra.mxu0 %v236
    %v414 = vpop.f32.mrf.mxu0
    %v415 = vadd.f32 0.0, %v414
    %v416 = vpop.f32.mrf.mxu0
    %v417 = vadd.f32 0.0, %v416
    %418 = vmatmul.bf16.gmra.mxu0 %v238
    %v419 = vpop.f32.mrf.mxu0
    %v420 = vadd.f32 0.0, %v419
    %v421 = vpop.f32.mrf.mxu0
    %v422 = vadd.f32 0.0, %v421
    %423 = vmatmul.bf16.gmra.mxu0 %v240
    %v424 = vpop.f32.mrf.mxu0
    %v425 = vadd.f32 0.0, %v424
    %v426 = vpop.f32.mrf.mxu0
    %v427 = vadd.f32 0.0, %v426
    %428 = vmatmul.bf16.gmra.mxu0 %v242
    %v429 = vpop.f32.mrf.mxu0
    %v430 = vadd.f32 0.0, %v429
    %v431 = vpop.f32.mrf.mxu0
    %v432 = vadd.f32 0.0, %v431
    %433 = vmatmul.bf16.gmra.mxu0 %v244
    %v434 = vpop.f32.mrf.mxu0
    %v435 = vadd.f32 0.0, %v434
    %v436 = vpop.f32.mrf.mxu0
    %v437 = vadd.f32 0.0, %v436
    %438 = vmatmul.bf16.gmra.mxu0 %v246
    %v439 = vpop.f32.mrf.mxu0
    %v440 = vadd.f32 0.0, %v439
    %v441 = vpop.f32.mrf.mxu0
    %v442 = vadd.f32 0.0, %v441
    %443 = vmatmul.bf16.gmra.mxu0 %v248
    %v444 = vpop.f32.mrf.mxu0
    %v445 = vadd.f32 0.0, %v444
    %v446 = vpop.f32.mrf.mxu0
    %v447 = vadd.f32 0.0, %v446
    %448 = vmatmul.bf16.gmra.mxu0 %v250
    %v449 = vpop.f32.mrf.mxu0
    %v450 = vadd.f32 0.0, %v449
    %v451 = vpop.f32.mrf.mxu0
    %v452 = vadd.f32 0.0, %v451
    %453 = vmatmul.bf16.gmra.mxu0 %v252
    %v454 = vpop.f32.mrf.mxu0
    %v455 = vadd.f32 0.0, %v454
    %v456 = vpop.f32.mrf.mxu0
    %v457 = vadd.f32 0.0, %v456
    %458 = vmatmul.bf16.gmra.mxu0 %v254
    %v459 = vpop.f32.mrf.mxu0
    %v460 = vadd.f32 0.0, %v459
    %v461 = vpop.f32.mrf.mxu0
    %v462 = vadd.f32 0.0, %v461
    %463 = vmatmul.bf16.gmra.mxu0 %v256
    %v464 = vpop.f32.mrf.mxu0
    %v465 = vadd.f32 0.0, %v464
    %v466 = vpop.f32.mrf.mxu0
    %v467 = vadd.f32 0.0, %v466
    %468 = vmatmul.bf16.gmra.mxu0 %v258
    %v469 = vpop.f32.mrf.mxu0
    %v470 = vadd.f32 0.0, %v469
    %v471 = vpop.f32.mrf.mxu0
    %v472 = vadd.f32 0.0, %v471
    %473 = vmatmul.bf16.gmra.mxu0 %v260
    %v474 = vpop.f32.mrf.mxu0
    %v475 = vadd.f32 0.0, %v474
    %v476 = vpop.f32.mrf.mxu0
    %v477 = vadd.f32 0.0, %v476
    %478 = vdwg.mxu0
    %479 = vmatpush.bf16.msra.mxu0 %v373
    %480 = vmatpush.bf16.msra.mxu0 %v372
    %481 = vmatpush.bf16.msra.mxu0 %v371
    %482 = vmatpush.bf16.msra.mxu0 %v370
    %483 = vmatpush.bf16.msra.mxu0 %v369
    %484 = vmatpush.bf16.msra.mxu0 %v368
    %485 = vmatpush.bf16.msra.mxu0 %v367
    %486 = vmatpush.bf16.msra.mxu0 %v366
    %487 = vmatmul.bf16.gmra.mxu0 %v231
    %v488 = vpop.f32.mrf.mxu0
    %v489 = vadd.f32 %v400, %v488
    %v490 = vpop.f32.mrf.mxu0
    %v491 = vadd.f32 %v402, %v490
    %492 = vmatmul.bf16.gmra.mxu0 %v233
    %v493 = vpop.f32.mrf.mxu0
    %v494 = vadd.f32 %v405, %v493
    %v495 = vpop.f32.mrf.mxu0
    %v496 = vadd.f32 %v407, %v495
    %497 = vmatmul.bf16.gmra.mxu0 %v235
    %v498 = vpop.f32.mrf.mxu0
    %v499 = vadd.f32 %v410, %v498
    %v500 = vpop.f32.mrf.mxu0
    %v501 = vadd.f32 %v412, %v500
    %502 = vmatmul.bf16.gmra.mxu0 %v237
    %v503 = vpop.f32.mrf.mxu0
    %v504 = vadd.f32 %v415, %v503
    %v505 = vpop.f32.mrf.mxu0
    %v506 = vadd.f32 %v417, %v505
    %507 = vmatmul.bf16.gmra.mxu0 %v239
    %v508 = vpop.f32.mrf.mxu0
    %v509 = vadd.f32 %v420, %v508
    %v510 = vpop.f32.mrf.mxu0
    %v511 = vadd.f32 %v422, %v510
    %512 = vmatmul.bf16.gmra.mxu0 %v241
    %v513 = vpop.f32.mrf.mxu0
    %v514 = vadd.f32 %v425, %v513
    %v515 = vpop.f32.mrf.mxu0
    %v516 = vadd.f32 %v427, %v515
    %517 = vmatmul.bf16.gmra.mxu0 %v243
    %v518 = vpop.f32.mrf.mxu0
    %v519 = vadd.f32 %v430, %v518
    %v520 = vpop.f32.mrf.mxu0
    %v521 = vadd.f32 %v432, %v520
    %522 = vmatmul.bf16.gmra.mxu0 %v245
    %v523 = vpop.f32.mrf.mxu0
    %v524 = vadd.f32 %v435, %v523
    %v525 = vpop.f32.mrf.mxu0
    %v526 = vadd.f32 %v437, %v525
    %527 = vmatmul.bf16.gmra.mxu0 %v247
    %v528 = vpop.f32.mrf.mxu0
    %v529 = vadd.f32 %v440, %v528
    %v530 = vpop.f32.mrf.mxu0
    %v531 = vadd.f32 %v442, %v530
    %532 = vmatmul.bf16.gmra.mxu0 %v249
    %v533 = vpop.f32.mrf.mxu0
    %v534 = vadd.f32 %v445, %v533
    %v535 = vpop.f32.mrf.mxu0
    %v536 = vadd.f32 %v447, %v535
    %537 = vmatmul.bf16.gmra.mxu0 %v251
    %v538 = vpop.f32.mrf.mxu0
    %v539 = vadd.f32 %v450, %v538
    %v540 = vpop.f32.mrf.mxu0
    %v541 = vadd.f32 %v452, %v540
    %542 = vmatmul.bf16.gmra.mxu0 %v253
    %v543 = vpop.f32.mrf.mxu0
    %v544 = vadd.f32 %v455, %v543
    %v545 = vpop.f32.mrf.mxu0
    %v546 = vadd.f32 %v457, %v545
    %547 = vmatmul.bf16.gmra.mxu0 %v255
    %v548 = vpop.f32.mrf.mxu0
    %v549 = vadd.f32 %v460, %v548
    %v550 = vpop.f32.mrf.mxu0
    %v551 = vadd.f32 %v462, %v550
    %552 = vmatmul.bf16.gmra.mxu0 %v257
    %v553 = vpop.f32.mrf.mxu0
    %v554 = vadd.f32 %v465, %v553
    %v555 = vpop.f32.mrf.mxu0
    %v556 = vadd.f32 %v467, %v555
    %557 = vmatmul.bf16.gmra.mxu0 %v259
    %v558 = vpop.f32.mrf.mxu0
    %v559 = vadd.f32 %v470, %v558
    %v560 = vpop.f32.mrf.mxu0
    %v561 = vadd.f32 %v472, %v560
    %562 = vmatmul.bf16.gmra.mxu0 %v261
    %v563 = vpop.f32.mrf.mxu0
    %v564 = vadd.f32 %v475, %v563
    %v565 = vpop.f32.mrf.mxu0
    %v566 = vadd.f32 %v477, %v565
    %567 = vdwg.mxu0
    %p568 = scmp.eq.s32.totalorder 0, 0
    // Predicated region
    $region30: #{tpu_custom_call.1} parent=1 // pred_check
      %p569 = pneg %p568
    $region31: #{tpu_custom_call.1} parent=1 // pred_check_branch
      %571 = sbr.rel (%p569) target = $region33
    $region32: #{tpu_custom_call.1} parent=1 // pred_region
      %572 = vst [vmem:[#allocation2] sm:$0xff] %v489
      %573 = vst [vmem:[#allocation2 + $0x8] sm:$0xff] %v491
      %574 = vst [vmem:[#allocation2 + $0x10] sm:$0xff] %v494
      %575 = vst [vmem:[#allocation2 + $0x18] sm:$0xff] %v496
      %576 = vst [vmem:[#allocation2 + $0x20] sm:$0xff] %v499
      %577 = vst [vmem:[#allocation2 + $0x28] sm:$0xff] %v501
      %578 = vst [vmem:[#allocation2 + $0x30] sm:$0xff] %v504
      %579 = vst [vmem:[#allocation2 + $0x38] sm:$0xff] %v506
      %580 = vst [vmem:[#allocation2 + $0x40] sm:$0xff] %v509
      %581 = vst [vmem:[#allocation2 + $0x48] sm:$0xff] %v511
      %582 = vst [vmem:[#allocation2 + $0x50] sm:$0xff] %v514
      %583 = vst [vmem:[#allocation2 + $0x58] sm:$0xff] %v516
      %584 = vst [vmem:[#allocation2 + $0x60] sm:$0xff] %v519
      %585 = vst [vmem:[#allocation2 + $0x68] sm:$0xff] %v521
      %586 = vst [vmem:[#allocation2 + $0x70] sm:$0xff] %v524
      %587 = vst [vmem:[#allocation2 + $0x78] sm:$0xff] %v526
      %588 = vst [vmem:[#allocation2 + $0x80] sm:$0xff] %v529
      %589 = vst [vmem:[#allocation2 + $0x88] sm:$0xff] %v531
      %590 = vst [vmem:[#allocation2 + $0x90] sm:$0xff] %v534
      %591 = vst [vmem:[#allocation2 + $0x98] sm:$0xff] %v536
      %592 = vst [vmem:[#allocation2 + $0xa0] sm:$0xff] %v539
      %593 = vst [vmem:[#allocation2 + $0xa8] sm:$0xff] %v541
      %594 = vst [vmem:[#allocation2 + $0xb0] sm:$0xff] %v544
      %595 = vst [vmem:[#allocation2 + $0xb8] sm:$0xff] %v546
      %596 = vst [vmem:[#allocation2 + $0xc0] sm:$0xff] %v549
      %597 = vst [vmem:[#allocation2 + $0xc8] sm:$0xff] %v551
      %598 = vst [vmem:[#allocation2 + $0xd0] sm:$0xff] %v554
      %599 = vst [vmem:[#allocation2 + $0xd8] sm:$0xff] %v556
      %600 = vst [vmem:[#allocation2 + $0xe0] sm:$0xff] %v559
      %601 = vst [vmem:[#allocation2 + $0xe8] sm:$0xff] %v561
      %602 = vst [vmem:[#allocation2 + $0xf0] sm:$0xff] %v564
      %603 = vst [vmem:[#allocation2 + $0xf8] sm:$0xff] %v566
    $region33: #{tpu_custom_call.1} parent=1 // pred_fallthru
      _
    %p604 = scmp.gt.s32.totalorder 0, 0
    // Predicated region
    $region34: #{tpu_custom_call.1} parent=1 // pred_check
      %p605 = pneg %p604
    $region35: #{tpu_custom_call.1} parent=1 // pred_check_branch
      %607 = sbr.rel (%p605) target = $region37
    $region36: #{tpu_custom_call.1} parent=1 // pred_region
      %v608 = vld [vmem:[#allocation2] sm:$0xff]
      %v609 = vld [vmem:[#allocation2 + $0x8] sm:$0xff]
      %v610 = vld [vmem:[#allocation2 + $0x10] sm:$0xff]
      %v611 = vld [vmem:[#allocation2 + $0x18] sm:$0xff]
      %v612 = vld [vmem:[#allocation2 + $0x20] sm:$0xff]
      %v613 = vld [vmem:[#allocation2 + $0x28] sm:$0xff]
      %v614 = vld [vmem:[#allocation2 + $0x30] sm:$0xff]
      %v615 = vld [vmem:[#allocation2 + $0x38] sm:$0xff]
      %v616 = vld [vmem:[#allocation2 + $0x40] sm:$0xff]
      %v617 = vld [vmem:[#allocation2 + $0x48] sm:$0xff]
      %v618 = vld [vmem:[#allocation2 + $0x50] sm:$0xff]
      %v619 = vld [vmem:[#allocation2 + $0x58] sm:$0xff]
      %v620 = vld [vmem:[#allocation2 + $0x60] sm:$0xff]
      %v621 = vld [vmem:[#allocation2 + $0x68] sm:$0xff]
      %v622 = vld [vmem:[#allocation2 + $0x70] sm:$0xff]
      %v623 = vld [vmem:[#allocation2 + $0x78] sm:$0xff]
      %v624 = vld [vmem:[#allocation2 + $0x80] sm:$0xff]
      %v625 = vld [vmem:[#allocation2 + $0x88] sm:$0xff]
      %v626 = vld [vmem:[#allocation2 + $0x90] sm:$0xff]
      %v627 = vld [vmem:[#allocation2 + $0x98] sm:$0xff]
      %v628 = vld [vmem:[#allocation2 + $0xa0] sm:$0xff]
      %v629 = vld [vmem:[#allocation2 + $0xa8] sm:$0xff]
      %v630 = vld [vmem:[#allocation2 + $0xb0] sm:$0xff]
      %v631 = vld [vmem:[#allocation2 + $0xb8] sm:$0xff]
      %v632 = vld [vmem:[#allocation2 + $0xc0] sm:$0xff]
      %v633 = vld [vmem:[#allocation2 + $0xc8] sm:$0xff]
      %v634 = vld [vmem:[#allocation2 + $0xd0] sm:$0xff]
      %v635 = vld [vmem:[#allocation2 + $0xd8] sm:$0xff]
      %v636 = vld [vmem:[#allocation2 + $0xe0] sm:$0xff]
      %v637 = vld [vmem:[#allocation2 + $0xe8] sm:$0xff]
      %v638 = vld [vmem:[#allocation2 + $0xf0] sm:$0xff]
      %v639 = vld [vmem:[#allocation2 + $0xf8] sm:$0xff]
      %v640 = vadd.f32 %v608, %v489
      %v641 = vadd.f32 %v609, %v491
      %v642 = vadd.f32 %v610, %v494
      %v643 = vadd.f32 %v611, %v496
      %v644 = vadd.f32 %v612, %v499
      %v645 = vadd.f32 %v613, %v501
      %v646 = vadd.f32 %v614, %v504
      %v647 = vadd.f32 %v615, %v506
      %v648 = vadd.f32 %v616, %v509
      %v649 = vadd.f32 %v617, %v511
      %v650 = vadd.f32 %v618, %v514
      %v651 = vadd.f32 %v619, %v516
      %v652 = vadd.f32 %v620, %v519
      %v653 = vadd.f32 %v621, %v521
      %v654 = vadd.f32 %v622, %v524
      %v655 = vadd.f32 %v623, %v526
      %v656 = vadd.f32 %v624, %v529
      %v657 = vadd.f32 %v625, %v531
      %v658 = vadd.f32 %v626, %v534
      %v659 = vadd.f32 %v627, %v536
      %v660 = vadd.f32 %v628, %v539
      %v661 = vadd.f32 %v629, %v541
      %v662 = vadd.f32 %v630, %v544
      %v663 = vadd.f32 %v631, %v546
      %v664 = vadd.f32 %v632, %v549
      %v665 = vadd.f32 %v633, %v551
      %v666 = vadd.f32 %v634, %v554
      %v667 = vadd.f32 %v635, %v556
      %v668 = vadd.f32 %v636, %v559
      %v669 = vadd.f32 %v637, %v561
      %v670 = vadd.f32 %v638, %v564
      %v671 = vadd.f32 %v639, %v566
      %672 = vst [vmem:[#allocation2] sm:$0xff] %v640
      %673 = vst [vmem:[#allocation2 + $0x8] sm:$0xff] %v641
      %674 = vst [vmem:[#allocation2 + $0x10] sm:$0xff] %v642
      %675 = vst [vmem:[#allocation2 + $0x18] sm:$0xff] %v643
      %676 = vst [vmem:[#allocation2 + $0x20] sm:$0xff] %v644
      %677 = vst [vmem:[#allocation2 + $0x28] sm:$0xff] %v645
      %678 = vst [vmem:[#allocation2 + $0x30] sm:$0xff] %v646
      %679 = vst [vmem:[#allocation2 + $0x38] sm:$0xff] %v647
      %680 = vst [vmem:[#allocation2 + $0x40] sm:$0xff] %v648
      %681 = vst [vmem:[#allocation2 + $0x48] sm:$0xff] %v649
      %682 = vst [vmem:[#allocation2 + $0x50] sm:$0xff] %v650
      %683 = vst [vmem:[#allocation2 + $0x58] sm:$0xff] %v651
      %684 = vst [vmem:[#allocation2 + $0x60] sm:$0xff] %v652
      %685 = vst [vmem:[#allocation2 + $0x68] sm:$0xff] %v653
      %686 = vst [vmem:[#allocation2 + $0x70] sm:$0xff] %v654
      %687 = vst [vmem:[#allocation2 + $0x78] sm:$0xff] %v655
      %688 = vst [vmem:[#allocation2 + $0x80] sm:$0xff] %v656
      %689 = vst [vmem:[#allocation2 + $0x88] sm:$0xff] %v657
      %690 = vst [vmem:[#allocation2 + $0x90] sm:$0xff] %v658
      %691 = vst [vmem:[#allocation2 + $0x98] sm:$0xff] %v659
      %692 = vst [vmem:[#allocation2 + $0xa0] sm:$0xff] %v660
      %693 = vst [vmem:[#allocation2 + $0xa8] sm:$0xff] %v661
      %694 = vst [vmem:[#allocation2 + $0xb0] sm:$0xff] %v662
      %695 = vst [vmem:[#allocation2 + $0xb8] sm:$0xff] %v663
      %696 = vst [vmem:[#allocation2 + $0xc0] sm:$0xff] %v664
      %697 = vst [vmem:[#allocation2 + $0xc8] sm:$0xff] %v665
      %698 = vst [vmem:[#allocation2 + $0xd0] sm:$0xff] %v666
      %699 = vst [vmem:[#allocation2 + $0xd8] sm:$0xff] %v667
      %700 = vst [vmem:[#allocation2 + $0xe0] sm:$0xff] %v668
      %701 = vst [vmem:[#allocation2 + $0xe8] sm:$0xff] %v669
      %702 = vst [vmem:[#allocation2 + $0xf0] sm:$0xff] %v670
      %703 = vst [vmem:[#allocation2 + $0xf8] sm:$0xff] %v671
    $region37: #{tpu_custom_call.1} parent=1 // pred_fallthru
      _
    // Predicated region
    $region38: #{tpu_custom_call.1} parent=1 // pred_check
      %p704 = pneg %p568
    $region39: #{tpu_custom_call.1} parent=1 // pred_check_branch
      %706 = sbr.rel (%p704) target = $region41
    $region40: #{tpu_custom_call.1} parent=1 // pred_region
      %v707 = vld [vmem:[#allocation2] sm:$0xff]
      %v708 = vld [vmem:[#allocation2 + $0x8] sm:$0xff]
      %v709 = vld [vmem:[#allocation2 + $0x10] sm:$0xff]
      %v710 = vld [vmem:[#allocation2 + $0x18] sm:$0xff]
      %v711 = vld [vmem:[#allocation2 + $0x20] sm:$0xff]
      %v712 = vld [vmem:[#allocation2 + $0x28] sm:$0xff]
      %v713 = vld [vmem:[#allocation2 + $0x30] sm:$0xff]
      %v714 = vld [vmem:[#allocation2 + $0x38] sm:$0xff]
      %v715 = vld [vmem:[#allocation2 + $0x40] sm:$0xff]
      %v716 = vld [vmem:[#allocation2 + $0x48] sm:$0xff]
      %v717 = vld [vmem:[#allocation2 + $0x50] sm:$0xff]
      %v718 = vld [vmem:[#allocation2 + $0x58] sm:$0xff]
      %v719 = vld [vmem:[#allocation2 + $0x60] sm:$0xff]
      %v720 = vld [vmem:[#allocation2 + $0x68] sm:$0xff]
      %v721 = vld [vmem:[#allocation2 + $0x70] sm:$0xff]
      %v722 = vld [vmem:[#allocation2 + $0x78] sm:$0xff]
      %v723 = vld [vmem:[#allocation2 + $0x80] sm:$0xff]
      %v724 = vld [vmem:[#allocation2 + $0x88] sm:$0xff]
      %v725 = vld [vmem:[#allocation2 + $0x90] sm:$0xff]
      %v726 = vld [vmem:[#allocation2 + $0x98] sm:$0xff]
      %v727 = vld [vmem:[#allocation2 + $0xa0] sm:$0xff]
      %v728 = vld [vmem:[#allocation2 + $0xa8] sm:$0xff]
      %v729 = vld [vmem:[#allocation2 + $0xb0] sm:$0xff]
      %v730 = vld [vmem:[#allocation2 + $0xb8] sm:$0xff]
      %v731 = vld [vmem:[#allocation2 + $0xc0] sm:$0xff]
      %v732 = vld [vmem:[#allocation2 + $0xc8] sm:$0xff]
      %v733 = vld [vmem:[#allocation2 + $0xd0] sm:$0xff]
      %v734 = vld [vmem:[#allocation2 + $0xd8] sm:$0xff]
      %v735 = vld [vmem:[#allocation2 + $0xe0] sm:$0xff]
      %v736 = vld [vmem:[#allocation2 + $0xe8] sm:$0xff]
      %v737 = vld [vmem:[#allocation2 + $0xf0] sm:$0xff]
      %v738 = vld [vmem:[#allocation2 + $0xf8] sm:$0xff]
      %v739 = vpack.c.bf16 %v708, %v707
      %v740 = vpack.c.bf16 %v710, %v709
      %v741 = vpack.c.bf16 %v712, %v711
      %v742 = vpack.c.bf16 %v714, %v713
      %v743 = vpack.c.bf16 %v716, %v715
      %v744 = vpack.c.bf16 %v718, %v717
      %v745 = vpack.c.bf16 %v720, %v719
      %v746 = vpack.c.bf16 %v722, %v721
      %v747 = vpack.c.bf16 %v724, %v723
      %v748 = vpack.c.bf16 %v726, %v725
      %v749 = vpack.c.bf16 %v728, %v727
      %v750 = vpack.c.bf16 %v730, %v729
      %v751 = vpack.c.bf16 %v732, %v731
      %v752 = vpack.c.bf16 %v734, %v733
      %v753 = vpack.c.bf16 %v736, %v735
      %v754 = vpack.c.bf16 %v738, %v737
      %v755 = vld [vmem:[#allocation8] sm:$0xf]
      %v756 = vld [vmem:[#allocation8 + $0x4] sm:$0xf]
      %v757 = vld [vmem:[#allocation8 + $0x8] sm:$0xf]
      %v758 = vld [vmem:[#allocation8 + $0xc] sm:$0xf]
      %v759 = vld [vmem:[#allocation8 + $0x10] sm:$0xf]
      %v760 = vld [vmem:[#allocation8 + $0x14] sm:$0xf]
      %v761 = vld [vmem:[#allocation8 + $0x18] sm:$0xf]
      %v762 = vld [vmem:[#allocation8 + $0x1c] sm:$0xf]
      %v763 = vld [vmem:[#allocation8 + $0x20] sm:$0xf]
      %v764 = vld [vmem:[#allocation8 + $0x24] sm:$0xf]
      %v765 = vld [vmem:[#allocation8 + $0x28] sm:$0xf]
      %v766 = vld [vmem:[#allocation8 + $0x2c] sm:$0xf]
      %v767 = vld [vmem:[#allocation8 + $0x30] sm:$0xf]
      %v768 = vld [vmem:[#allocation8 + $0x34] sm:$0xf]
      %v769 = vld [vmem:[#allocation8 + $0x38] sm:$0xf]
      %v770 = vld [vmem:[#allocation8 + $0x3c] sm:$0xf]
      %v771 = vld [vmem:[%s3] sm:$0x1]
      %v773 = vperm.slane %v771, 0
      %v791 = vunpack.c.l.b16 %v755
      %v792 = vunpack.c.l.b16 %v756
      %v793 = vunpack.c.l.b16 %v757
      %v794 = vunpack.c.l.b16 %v758
      %v795 = vunpack.c.l.b16 %v759
      %v796 = vunpack.c.l.b16 %v760
      %v797 = vunpack.c.l.b16 %v761
      %v798 = vunpack.c.l.b16 %v762
      %v799 = vunpack.c.l.b16 %v763
      %v800 = vunpack.c.l.b16 %v764
      %v801 = vunpack.c.l.b16 %v765
      %v802 = vunpack.c.l.b16 %v766
      %v803 = vunpack.c.l.b16 %v767
      %v804 = vunpack.c.l.b16 %v768
      %v805 = vunpack.c.l.b16 %v769
      %v806 = vunpack.c.l.b16 %v770
      %v807 = vpack.c.b16 %v792, %v791
      %v808 = vpack.c.b16 %v794, %v793
      %v809 = vpack.c.b16 %v796, %v795
      %v810 = vpack.c.b16 %v798, %v797
      %v811 = vpack.c.b16 %v800, %v799
      %v812 = vpack.c.b16 %v802, %v801
      %v813 = vpack.c.b16 %v804, %v803
      %v814 = vpack.c.b16 %v806, %v805
      %823 = vmatpush.bf16.msra.mxu0 %v814
      %824 = vmatpush.bf16.msra.mxu0 %v813
      %825 = vmatpush.bf16.msra.mxu0 %v812
      %826 = vmatpush.bf16.msra.mxu0 %v811
      %827 = vmatpush.bf16.msra.mxu0 %v810
      %828 = vmatpush.bf16.msra.mxu0 %v809
      %829 = vmatpush.bf16.msra.mxu0 %v808
      %830 = vmatpush.bf16.msra.mxu0 %v807
      %831 = vmatmul.bf16.gmra.mxu0 %v739
      %v832 = vpop.f32.mrf.mxu0
      %v833 = vadd.f32 %v773, %v832
      %v834 = vpop.f32.mrf.mxu0
      %v835 = vadd.f32 %v773, %v834
      %836 = vmatmul.bf16.gmra.mxu0 %v740
      %v837 = vpop.f32.mrf.mxu0
      %v838 = vadd.f32 %v773, %v837
      %v839 = vpop.f32.mrf.mxu0
      %v840 = vadd.f32 %v773, %v839
      %841 = vmatmul.bf16.gmra.mxu0 %v741
      %v842 = vpop.f32.mrf.mxu0
      %v843 = vadd.f32 %v773, %v842
      %v844 = vpop.f32.mrf.mxu0
      %v845 = vadd.f32 %v773, %v844
      %846 = vmatmul.bf16.gmra.mxu0 %v742
      %v847 = vpop.f32.mrf.mxu0
      %v848 = vadd.f32 %v773, %v847
      %v849 = vpop.f32.mrf.mxu0
      %v850 = vadd.f32 %v773, %v849
      %851 = vmatmul.bf16.gmra.mxu0 %v743
      %v852 = vpop.f32.mrf.mxu0
      %v853 = vadd.f32 %v773, %v852
      %v854 = vpop.f32.mrf.mxu0
      %v855 = vadd.f32 %v773, %v854
      %856 = vmatmul.bf16.gmra.mxu0 %v744
      %v857 = vpop.f32.mrf.mxu0
      %v858 = vadd.f32 %v773, %v857
      %v859 = vpop.f32.mrf.mxu0
      %v860 = vadd.f32 %v773, %v859
      %861 = vmatmul.bf16.gmra.mxu0 %v745
      %v862 = vpop.f32.mrf.mxu0
      %v863 = vadd.f32 %v773, %v862
      %v864 = vpop.f32.mrf.mxu0
      %v865 = vadd.f32 %v773, %v864
      %866 = vmatmul.bf16.gmra.mxu0 %v746
      %v867 = vpop.f32.mrf.mxu0
      %v868 = vadd.f32 %v773, %v867
      %v869 = vpop.f32.mrf.mxu0
      %v870 = vadd.f32 %v773, %v869
      %871 = vmatmul.bf16.gmra.mxu0 %v747
      %v872 = vpop.f32.mrf.mxu0
      %v873 = vadd.f32 %v773, %v872
      %v874 = vpop.f32.mrf.mxu0
      %v875 = vadd.f32 %v773, %v874
      %876 = vmatmul.bf16.gmra.mxu0 %v748
      %v877 = vpop.f32.mrf.mxu0
      %v878 = vadd.f32 %v773, %v877
      %v879 = vpop.f32.mrf.mxu0
      %v880 = vadd.f32 %v773, %v879
      %881 = vmatmul.bf16.gmra.mxu0 %v749
      %v882 = vpop.f32.mrf.mxu0
      %v883 = vadd.f32 %v773, %v882
      %v884 = vpop.f32.mrf.mxu0
      %v885 = vadd.f32 %v773, %v884
      %886 = vmatmul.bf16.gmra.mxu0 %v750
      %v887 = vpop.f32.mrf.mxu0
      %v888 = vadd.f32 %v773, %v887
      %v889 = vpop.f32.mrf.mxu0
      %v890 = vadd.f32 %v773, %v889
      %891 = vmatmul.bf16.gmra.mxu0 %v751
      %v892 = vpop.f32.mrf.mxu0
      %v893 = vadd.f32 %v773, %v892
      %v894 = vpop.f32.mrf.mxu0
      %v895 = vadd.f32 %v773, %v894
      %896 = vmatmul.bf16.gmra.mxu0 %v752
      %v897 = vpop.f32.mrf.mxu0
      %v898 = vadd.f32 %v773, %v897
      %v899 = vpop.f32.mrf.mxu0
      %v900 = vadd.f32 %v773, %v899
      %901 = vmatmul.bf16.gmra.mxu0 %v753
      %v902 = vpop.f32.mrf.mxu0
      %v903 = vadd.f32 %v773, %v902
      %v904 = vpop.f32.mrf.mxu0
      %v905 = vadd.f32 %v773, %v904
      %906 = vmatmul.bf16.gmra.mxu0 %v754
      %v907 = vpop.f32.mrf.mxu0
      %v908 = vadd.f32 %v773, %v907
      %v909 = vpop.f32.mrf.mxu0
      %v910 = vadd.f32 %v773, %v909
      %911 = vdwg.mxu0
      %v912 = vmax.f32 %v833, 0.0
      %v913 = vmax.f32 %v835, 0.0
      %v914 = vmax.f32 %v838, 0.0
      %v915 = vmax.f32 %v840, 0.0
      %v916 = vmax.f32 %v843, 0.0
      %v917 = vmax.f32 %v845, 0.0
      %v918 = vmax.f32 %v848, 0.0
      %v919 = vmax.f32 %v850, 0.0
      %v920 = vmax.f32 %v853, 0.0
      %v921 = vmax.f32 %v855, 0.0
      %v922 = vmax.f32 %v858, 0.0
      %v923 = vmax.f32 %v860, 0.0
      %v924 = vmax.f32 %v863, 0.0
      %v925 = vmax.f32 %v865, 0.0
      %v926 = vmax.f32 %v868, 0.0
      %v927 = vmax.f32 %v870, 0.0
      %v928 = vmax.f32 %v873, 0.0
      %v929 = vmax.f32 %v875, 0.0
      %v930 = vmax.f32 %v878, 0.0
      %v931 = vmax.f32 %v880, 0.0
      %v932 = vmax.f32 %v883, 0.0
      %v933 = vmax.f32 %v885, 0.0
      %v934 = vmax.f32 %v888, 0.0
      %v935 = vmax.f32 %v890, 0.0
      %v936 = vmax.f32 %v893, 0.0
      %v937 = vmax.f32 %v895, 0.0
      %v938 = vmax.f32 %v898, 0.0
      %v939 = vmax.f32 %v900, 0.0
      %v940 = vmax.f32 %v903, 0.0
      %v941 = vmax.f32 %v905, 0.0
      %v942 = vmax.f32 %v908, 0.0
      %v943 = vmax.f32 %v910, 0.0
      %v944 = vpack.c.bf16 %v912, %v912
      %v945 = vpack.c.bf16 %v913, %v913
      %v946 = vpack.c.bf16 %v914, %v914
      %v947 = vpack.c.bf16 %v915, %v915
      %v948 = vpack.c.bf16 %v916, %v916
      %v949 = vpack.c.bf16 %v917, %v917
      %v950 = vpack.c.bf16 %v918, %v918
      %v951 = vpack.c.bf16 %v919, %v919
      %v952 = vpack.c.bf16 %v920, %v920
      %v953 = vpack.c.bf16 %v921, %v921
      %v954 = vpack.c.bf16 %v922, %v922
      %v955 = vpack.c.bf16 %v923, %v923
      %v956 = vpack.c.bf16 %v924, %v924
      %v957 = vpack.c.bf16 %v925, %v925
      %v958 = vpack.c.bf16 %v926, %v926
      %v959 = vpack.c.bf16 %v927, %v927
      %v960 = vpack.c.bf16 %v928, %v928
      %v961 = vpack.c.bf16 %v929, %v929
      %v962 = vpack.c.bf16 %v930, %v930
      %v963 = vpack.c.bf16 %v931, %v931
      %v964 = vpack.c.bf16 %v932, %v932
      %v965 = vpack.c.bf16 %v933, %v933
      %v966 = vpack.c.bf16 %v934, %v934
      %v967 = vpack.c.bf16 %v935, %v935
      %v968 = vpack.c.bf16 %v936, %v936
      %v969 = vpack.c.bf16 %v937, %v937
      %v970 = vpack.c.bf16 %v938, %v938
      %v971 = vpack.c.bf16 %v939, %v939
      %v972 = vpack.c.bf16 %v940, %v940
      %v973 = vpack.c.bf16 %v941, %v941
      %v974 = vpack.c.bf16 %v942, %v942
      %v975 = vpack.c.bf16 %v943, %v943
      %976 = vst [vmem:[#allocation9] sm:$0xf] %v944
      %977 = vst [vmem:[#allocation9 + $0x4] sm:$0xf] %v945
      %978 = vst [vmem:[#allocation9 + $0x8] sm:$0xf] %v946
      %979 = vst [vmem:[#allocation9 + $0xc] sm:$0xf] %v947
      %980 = vst [vmem:[#allocation9 + $0x10] sm:$0xf] %v948
      %981 = vst [vmem:[#allocation9 + $0x14] sm:$0xf] %v949
      %982 = vst [vmem:[#allocation9 + $0x18] sm:$0xf] %v950
      %983 = vst [vmem:[#allocation9 + $0x1c] sm:$0xf] %v951
      %984 = vst [vmem:[#allocation9 + $0x20] sm:$0xf] %v952
      %985 = vst [vmem:[#allocation9 + $0x24] sm:$0xf] %v953
      %986 = vst [vmem:[#allocation9 + $0x28] sm:$0xf] %v954
      %987 = vst [vmem:[#allocation9 + $0x2c] sm:$0xf] %v955
      %988 = vst [vmem:[#allocation9 + $0x30] sm:$0xf] %v956
      %989 = vst [vmem:[#allocation9 + $0x34] sm:$0xf] %v957
      %990 = vst [vmem:[#allocation9 + $0x38] sm:$0xf] %v958
      %991 = vst [vmem:[#allocation9 + $0x3c] sm:$0xf] %v959
      %992 = vst [vmem:[#allocation9 + $0x40] sm:$0xf] %v960
      %993 = vst [vmem:[#allocation9 + $0x44] sm:$0xf] %v961
      %994 = vst [vmem:[#allocation9 + $0x48] sm:$0xf] %v962
      %995 = vst [vmem:[#allocation9 + $0x4c] sm:$0xf] %v963
      %996 = vst [vmem:[#allocation9 + $0x50] sm:$0xf] %v964
      %997 = vst [vmem:[#allocation9 + $0x54] sm:$0xf] %v965
      %998 = vst [vmem:[#allocation9 + $0x58] sm:$0xf] %v966
      %999 = vst [vmem:[#allocation9 + $0x5c] sm:$0xf] %v967
      %1000 = vst [vmem:[#allocation9 + $0x60] sm:$0xf] %v968
      %1001 = vst [vmem:[#allocation9 + $0x64] sm:$0xf] %v969
      %1002 = vst [vmem:[#allocation9 + $0x68] sm:$0xf] %v970
      %1003 = vst [vmem:[#allocation9 + $0x6c] sm:$0xf] %v971
      %1004 = vst [vmem:[#allocation9 + $0x70] sm:$0xf] %v972
      %1005 = vst [vmem:[#allocation9 + $0x74] sm:$0xf] %v973
      %1006 = vst [vmem:[#allocation9 + $0x78] sm:$0xf] %v974
      %1007 = vst [vmem:[#allocation9 + $0x7c] sm:$0xf] %v975
    $region41: #{tpu_custom_call.1} parent=1 // pred_fallthru
      _
    // Predicated region
    $region42: #{tpu_custom_call.1} parent=1 // pred_check
      _
    $region43: #{tpu_custom_call.1} parent=1 // pred_check_branch
      %1009 = sbr.rel (0) target = $region45
    $region44: #{tpu_custom_call.1} parent=1 // pred_region
      %1011 = vsyncadd [#allocation5], 0
      %s1012 = sshll.u32 [#allocation9], 4
      %s1013 = int_to_ptr.vmem [resolvable:$true] %s1012
      %s1014 = sshll.u32 %s4, 4
      %s1015 = int_to_ptr.hbm [resolvable:$true] %s1014
      %1020 = dma.vmem_to_hbm [thread:$0]  %s1013, 2048, %s1015, [#allocation5], 64, 64, 4
    $region45: #{tpu_custom_call.1} parent=1 // pred_fallthru
      _
    // Predicated region
    $region46: #{tpu_custom_call.1} parent=1 // pred_check
      _
    $region47: #{tpu_custom_call.1} parent=1 // pred_check_branch
      %1022 = sbr.rel (0) target = $region49
    $region48: #{tpu_custom_call.1} parent=1 // pred_region
      %1024 = dma.done [#allocation5], 2048
    $region49: #{tpu_custom_call.1} parent=1 // pred_fallthru
      _
    %1025 = vsyncpa [#allocation4], 1
    %1026 = vsyncpa [#allocation7], 1
    %1027 = vsyncpa [#allocation5], 1

</llo_original>
